<compile_context>
chip_gen: v6e
topology: v6e:2x2x1
jax: 0.10.0
libtpu: 0.0.40
codegen_flags: <defaults>
</compile_context>

<pallas_src>
from functools import partial

import jax
import jax.numpy as jnp
from jax import lax
from jax.experimental import pallas as pl
from jax.experimental.pallas import tpu as pltpu


def _round_up(x, m):
    return ((x + m - 1) // m) * m


def _cdiv(a, b):
    return -(-a // b)


# Splitting the row axis (for v7x's two TensorCores, or to even out the tile
# count) multiplies total weight-stream traffic by the tile count; it is only
# free when every resulting tile stays above the compute/memory roofline knee
# (~680 flops/byte on v6e, ~620 per-TC on v7x), so never split below this.
_MIN_SPLIT_ROWS = 768


def _row_tile_plan(rows, target):
    """Pick (r_tile, n_r, rows_padded) for the outer 'parallel' grid axis."""
    target = max(8, min(target, _round_up(rows, 8)))
    n_r = _cdiv(rows, target)
    if n_r == 1 and _cdiv(rows, 2) >= _MIN_SPLIT_ROWS:
        n_r = 2                       # give v7x's second TensorCore work
    elif n_r > 1 and n_r % 2 == 1 and _cdiv(rows, n_r + 1) >= _MIN_SPLIT_ROWS:
        n_r += 1                      # even tile count balances the two TCs
    base = _cdiv(rows, n_r)
    # Prefer MXU-aligned (multiple-of-256) tiles when that does not bloat the
    # padded row count; otherwise fall back to 128 / 8 (sublane) granularity.
    r_tile = _round_up(base, 8)
    for gran in (256, 128, 8):
        cand = _round_up(base, gran)
        if cand * n_r - rows <= max(rows // 8, 8):
            r_tile = cand
            break
    rows_p = r_tile * n_r
    return r_tile, n_r, rows_p


def _vocab_tile_plan(vocab, target):
    """Pick (v_tile, n_v, vocab_padded, needs_mask) for the reduction axis.

    When V is a multiple of 128 (all production Llama vocab sizes) the tile is
    chosen to divide V exactly, so the [V, H] weight is never padded/copied in
    HBM and the in-kernel column mask is compiled out entirely.
    """
    target = max(128, min(_round_up(target, 128), _round_up(vocab, 128)))
    if vocab % 128 == 0:
        v_tile = 128
        d = target
        while d >= 128:
            if vocab % d == 0:
                v_tile = d
                break
            d -= 128
        return v_tile, vocab // v_tile, vocab, False
    # Rare path (V not lane-aligned): pad by at most 127 vocab rows and mask.
    v_tile = min(target, _round_up(vocab, 128))
    v_pad = _round_up(vocab, v_tile)
    return v_tile, v_pad // v_tile, v_pad, True


def _auto_vmem_limit():
    """~85-90% of this chip's VMEM capacity; v7x-safe 56 MiB fallback."""
    try:
        cap = int(pltpu.get_tpu_info().vmem_capacity_bytes)
        return max(32 << 20, cap - max(cap // 8, 8 << 20))
    except Exception:  # emulator / query unavailable
        return 56 << 20


def _cls_loss_kernel(hs_ref, w_ref, lab_ref, out_ref,
                     m_ref, l_ref, ll_ref, *, vocab_size, mask_cols):
    """One (row_tile, vocab_tile) grid step of the fused lm_head + CE loss.

    Grid = (n_row_tiles, n_vocab_tiles); vocab is the inner ("arbitrary")
    reduction axis.  Running max / sum-exp / label-logit accumulators live in
    (r_tile, 1) f32 VMEM scratch, re-initialized at v == 0; the per-row-tile
    loss sum is written to a lane-dense (1, 1, 128) output block at the last
    vocab step.
    """
    v = pl.program_id(1)

    @pl.when(v == 0)
    def _():
        m_ref[...] = jnp.full_like(m_ref, -jnp.inf)
        l_ref[...] = jnp.zeros_like(l_ref)
        ll_ref[...] = jnp.zeros_like(ll_ref)

    # [R, Vt] logits tile on the MXU.  Contract H (dim 1 of both operands) so
    # the weight stays in its native [V, H] layout -- no transpose anywhere.
    logits = lax.dot_general(
        hs_ref[...], w_ref[...],
        dimension_numbers=(((1,), (1,)), ((), ())),
        preferred_element_type=jnp.float32)

    r_t, v_t = logits.shape
    col = lax.broadcasted_iota(jnp.int32, (r_t, v_t), 1) + v * v_t
    if mask_cols:
        # Only compiled in when V is not a multiple of 128: padded vocab
        # columns must not contribute to the log-sum-exp.
        logits = jnp.where(col < vocab_size, logits, -jnp.inf)

    labels = lab_ref[...]                                    # [R,1] int32, <0 == ignore

    # Online (streaming) log-sum-exp across vocab tiles.
    tile_max = jnp.max(logits, axis=-1, keepdims=True)       # [R, 1]
    m_new = jnp.maximum(m_ref[...], tile_max)
    l_ref[...] = jnp.exp(m_ref[...] - m_new) * l_ref[...] + jnp.sum(
        jnp.exp(logits - m_new), axis=-1, keepdims=True)
    m_ref[...] = m_new

    # Tile-local label-logit gather via one-hot compare (cheap VPU work,
    # hidden under the MXU matmul).
    ll_ref[...] += jnp.sum(jnp.where(col == labels, logits, 0.0),
                           axis=-1, keepdims=True)

    @pl.when(v == pl.num_programs(1) - 1)
    def _():
        lse = m_ref[...] + jnp.log(l_ref[...])                # [R, 1]
        per_row = jnp.where(labels >= 0, lse - ll_ref[...], 0.0)
        tile_sum = jnp.sum(per_row)
        lane = lax.broadcasted_iota(jnp.int32, (1, 1, 128), 2)
        out_ref[...] = jnp.where(lane == 0, tile_sum, 0.0)


def llama_cls_loss(hidden_states, input_ids, lm_head_weight, *,
                   row_tile=1024, vocab_tile=512, vmem_limit_bytes=None):
    """Fused lm_head + shifted mean cross-entropy (LlamaCls_.forward).

    hidden_states : [S, B, H] (seq-first, as in the PyTorch module), f32/bf16.
    input_ids     : [B, S] int.
    lm_head_weight: [V, H] (PyTorch nn.Linear layout, no bias), same dtype as
                    hidden_states.  No up-casting happens here: bf16 inputs run
                    the MXU at bf16 rate and accumulate in f32.

    Arithmetic intensity == row_tile flops/byte (the whole [V,H] weight is
    re-streamed once per row tile), so keep row_tile above the roofline knee:
      v5e : row_tile 256-512,  vocab_tile 512,      vmem_limit ~96<<20
      v6e : row_tile 768-1024, vocab_tile 512-1024, vmem_limit ~96-112<<20
      v7x : row_tile 768-1024, vocab_tile 512,      vmem_limit ~52-56<<20
    vmem_limit_bytes is derived from the chip's VMEM capacity when None.
    """
    S, B, H = hidden_states.shape
    V, H2 = lm_head_weight.shape
    assert H == H2, (H, H2)

    rows = S * B
    # Free contiguous flatten -- no [S,B,H] -> [B,S,H] transpose / HBM copy.
    hs = hidden_states.reshape(rows, H)

    # Shifted labels in flattened (s-major, b-minor) row order:
    #   row r = s*B + b  ->  label = input_ids[b, s+1]  (s < S-1), else -1.
    # Negative labels (-1 pad, torch's -100 ignore_index) are ignored.
    ids = input_ids.astype(jnp.int32)
    lab_sb = jnp.concatenate(
        [jnp.transpose(ids[:, 1:]),                 # [S-1, B]
         jnp.full((1, B), -1, jnp.int32)], axis=0)  # [S,   B]
    labels = jnp.where(lab_sb < 0, -1, lab_sb).reshape(rows, 1)
    n_valid = jnp.sum((labels >= 0).astype(jnp.float32))

    r_tile, n_r, rows_p = _row_tile_plan(rows, row_tile)
    v_tile, n_v, v_pad, mask_cols = _vocab_tile_plan(V, vocab_tile)

    if rows_p != rows:
        hs = jnp.pad(hs, ((0, rows_p - rows), (0, 0)))
        labels = jnp.pad(labels, ((0, rows_p - rows), (0, 0)),
                         constant_values=-1)
    w = lm_head_weight
    if v_pad != V:
        # Only when V is not a multiple of 128 (never for production Llama
        # vocab sizes): pads at most 127 weight rows, masked to -inf in-kernel.
        w = jnp.pad(w, ((0, v_pad - V), (0, 0)))

    if vmem_limit_bytes is None:
        vmem_limit_bytes = _auto_vmem_limit()

    kernel = partial(_cls_loss_kernel, vocab_size=V, mask_cols=mask_cols)

    partial_sums = pl.pallas_call(
        kernel,
        out_shape=jax.ShapeDtypeStruct((n_r, 1, 128), jnp.float32),
        grid_spec=pltpu.PrefetchScalarGridSpec(
            num_scalar_prefetch=0,
            grid=(n_r, n_v),
            in_specs=[
                # Activations: resident across the inner vocab axis.
                # TODO(synk): if VMEM-tight on v7x, pass
                # pipeline_mode=pl.Buffered(1) here to single-buffer it.
                pl.BlockSpec((r_tile, H), lambda r, v: (r, 0)),
                # Weight: streamed vocab tile by vocab tile, native [V,H] layout.
                pl.BlockSpec((v_tile, H), lambda r, v: (v, 0)),
                # Shifted labels for this row tile (resident across vocab axis).
                pl.BlockSpec((r_tile, 1), lambda r, v: (r, 0)),
            ],
            # Lane-dense per-row-tile partial sums; reduced in JAX below.
            out_specs=pl.BlockSpec((1, 1, 128), lambda r, v: (r, 0, 0)),
            scratch_shapes=[
                pltpu.VMEM((r_tile, 1), jnp.float32),   # running max   m
                pltpu.VMEM((r_tile, 1), jnp.float32),   # running sum   l
                pltpu.VMEM((r_tile, 1), jnp.float32),   # label logit   ll
            ],
        ),
        compiler_params=pltpu.CompilerParams(
            dimension_semantics=("parallel", "arbitrary"),
            vmem_limit_bytes=vmem_limit_bytes),
    )(hs, w, labels)

    # CrossEntropyLoss(mean): divide by the count of non-ignored targets.
    return jnp.sum(partial_sums) / jnp.maximum(n_valid, 1.0)


def _reference_loss(hidden_states, input_ids, lm_head_weight):
    hs = jnp.transpose(hidden_states, (1, 0, 2)).astype(jnp.float32)
    w = lm_head_weight.astype(jnp.float32)
    logits = jnp.einsum("bsh,vh->bsv", hs, w, precision=lax.Precision.HIGHEST)
    V = w.shape[0]
    shift_logits = logits[:, :-1, :].reshape(-1, V)
    shift_labels = input_ids[:, 1:].reshape(-1).astype(jnp.int32)
    lse = jax.scipy.special.logsumexp(shift_logits, axis=-1)
    ll = jnp.take_along_axis(shift_logits, shift_labels[:, None], axis=-1)[:, 0]
    return jnp.mean(lse - ll)


if __name__ == "__main__":
    # Small shapes consistent with the module.
    S, B, H = 9, 2, 32

    key = jax.random.PRNGKey(0)
    k1, k2, k3, k4 = jax.random.split(key, 4)
    hidden_states = jax.random.normal(k1, (S, B, H), dtype=jnp.float32)

    # --- Case A: V not lane-aligned (exercises the vocab-padding mask path).
    V = 160
    input_ids = jax.random.randint(k2, (B, S), 0, V, dtype=jnp.int32)
    lm_head_weight = 0.05 * jax.random.normal(k3, (V, H), dtype=jnp.float32)
    ref = _reference_loss(hidden_states, input_ids, lm_head_weight)

    # 1) default tiling (single tile per axis at these shapes).
    loss = llama_cls_loss(hidden_states, input_ids, lm_head_weight)
    jax.block_until_ready(loss)
    assert jnp.allclose(loss, ref, rtol=1e-3, atol=1e-5), (loss, ref)

    # 2) forced multi-tile grid (3 row tiles x 2 vocab tiles) to exercise the
    #    online LSE, vocab-column masking and row-padding paths.
    loss_t = llama_cls_loss(hidden_states, input_ids, lm_head_weight,
                            row_tile=8, vocab_tile=128)
    jax.block_until_ready(loss_t)
    assert jnp.allclose(loss_t, ref, rtol=1e-3, atol=1e-5), (loss_t, ref)

    # 3) bf16 activations + weight (recommended production dtype), f32 accum.
    hs_bf16 = hidden_states.astype(jnp.bfloat16)
    w_bf16 = lm_head_weight.astype(jnp.bfloat16)
    ref_bf16 = _reference_loss(hs_bf16, input_ids, w_bf16)
    loss_bf16 = llama_cls_loss(hs_bf16, input_ids, w_bf16,
                               row_tile=8, vocab_tile=128)
    jax.block_until_ready(loss_bf16)
    assert jnp.allclose(loss_bf16, ref_bf16, rtol=1e-2, atol=1e-3), (loss_bf16, ref_bf16)

    # --- Case B: V a multiple of 128 (production path: vocab tile divides V,
    #     no weight padding, column mask compiled out).
    V2 = 256
    input_ids2 = jax.random.randint(k4, (B, S), 0, V2, dtype=jnp.int32)
    w2 = 0.05 * jax.random.normal(k3, (V2, H), dtype=jnp.float32)
    ref2 = _reference_loss(hidden_states, input_ids2, w2)
    loss2 = llama_cls_loss(hidden_states, input_ids2, w2,
                           row_tile=8, vocab_tile=128)
    jax.block_until_ready(loss2)
    assert jnp.allclose(loss2, ref2, rtol=1e-3, atol=1e-5), (loss2, ref2)

    print("KERNEL_OK")
</pallas_src>

<mosaic_0001>
module attributes {stable_mosaic.version = 11 : i64} {
  func.func @_cls_loss_kernel(%arg0: i32, %arg1: i32, %arg2: memref<24x32xf32, #tpu.memory_space<vmem>>, %arg3: memref<256x32xf32, #tpu.memory_space<vmem>>, %arg4: memref<24x1xi32, #tpu.memory_space<vmem>>, %arg5: memref<1x1x128xf32, #tpu.memory_space<vmem>>, %arg6: memref<24x1xf32, #tpu.memory_space<vmem>>, %arg7: memref<24x1xf32, #tpu.memory_space<vmem>>, %arg8: memref<24x1xf32, #tpu.memory_space<vmem>>) attributes {dimension_semantics = [#tpu.dimension_semantics<parallel>, #tpu.dimension_semantics<arbitrary>], iteration_bounds = array<i64: 1, 1>, scalar_prefetch = 0 : i64, scratch_operands = 3 : i64, tpu.core_type = #tpu.core_type<tc>, window_params = [{transform_indices = @transform_0, window_bounds = array<i64: 24, 32>}, {transform_indices = @transform_1, window_bounds = array<i64: 256, 32>}, {transform_indices = @transform_2, window_bounds = array<i64: 24, 1>}, {transform_indices = @transform_3, window_bounds = array<i64: 1, 1, 128>}]} {
    %c0_i32 = arith.constant 0 : i32
    %0 = arith.cmpi eq, %arg1, %c0_i32 : i32
    %1 = arith.extui %0 : i1 to i32
    %c0_i32_0 = arith.constant 0 : i32
    %2 = arith.cmpi ne, %1, %c0_i32_0 : i32
    scf.if %2 {
      %cst_27 = arith.constant 0xFF800000 : f32
      %44 = vector.broadcast %cst_27 : f32 to vector<24x1xf32>
      %c0_28 = arith.constant 0 : index
      %c0_29 = arith.constant 0 : index
      %45 = vector.load %arg6[%c0_28, %c0_29] : memref<24x1xf32, #tpu.memory_space<vmem>>, vector<24x1xf32>
      tpu.vector_store %arg6[%c0_28, %c0_29], %44 {strides = array<i32>} : memref<24x1xf32, #tpu.memory_space<vmem>>, vector<24x1xf32>,
      %cst_30 = arith.constant 0.000000e+00 : f32
      %46 = vector.broadcast %cst_30 : f32 to vector<24x1xf32>
      %c0_31 = arith.constant 0 : index
      %c0_32 = arith.constant 0 : index
      %47 = vector.load %arg7[%c0_31, %c0_32] : memref<24x1xf32, #tpu.memory_space<vmem>>, vector<24x1xf32>
      tpu.vector_store %arg7[%c0_31, %c0_32], %46 {strides = array<i32>} : memref<24x1xf32, #tpu.memory_space<vmem>>, vector<24x1xf32>,
      %cst_33 = arith.constant 0.000000e+00 : f32
      %48 = vector.broadcast %cst_33 : f32 to vector<24x1xf32>
      %c0_34 = arith.constant 0 : index
      %c0_35 = arith.constant 0 : index
      %49 = vector.load %arg8[%c0_34, %c0_35] : memref<24x1xf32, #tpu.memory_space<vmem>>, vector<24x1xf32>
      tpu.vector_store %arg8[%c0_34, %c0_35], %48 {strides = array<i32>} : memref<24x1xf32, #tpu.memory_space<vmem>>, vector<24x1xf32>,
    } else {
    }
    %c0 = arith.constant 0 : index
    %c0_1 = arith.constant 0 : index
    %3 = vector.load %arg2[%c0, %c0_1] : memref<24x32xf32, #tpu.memory_space<vmem>>, vector<24x32xf32>
    %c0_2 = arith.constant 0 : index
    %c0_3 = arith.constant 0 : index
    %4 = vector.load %arg3[%c0_2, %c0_3] : memref<256x32xf32, #tpu.memory_space<vmem>>, vector<256x32xf32>
    %cst = arith.constant dense<0.000000e+00> : vector<24x256xf32>
    %5 = tpu.matmul %3, %4, %cst {dimension_numbers = #tpu.dot_dimension_numbers<[1], [1], [0], [0], [0, 0, 1, 0], [], []>} : vector<24x32xf32>, vector<256x32xf32>, vector<24x256xf32> -> vector<24x256xf32>
    %6 = tpu.iota {dimensions = array<i32: 1>} : vector<24x256xi32>
    %c256_i32 = arith.constant 256 : i32
    %7 = arith.muli %arg1, %c256_i32 : i32
    %8 = vector.broadcast %7 : i32 to vector<24x256xi32>
    %9 = arith.addi %6, %8 : vector<24x256xi32>
    %c160_i32 = arith.constant 160 : i32
    %10 = vector.broadcast %c160_i32 : i32 to vector<24x256xi32>
    %11 = arith.cmpi slt, %9, %10 : vector<24x256xi32>
    %cst_4 = arith.constant 0xFF800000 : f32
    %12 = vector.broadcast %cst_4 : f32 to vector<24x256xf32>
    %13 = arith.select %11, %5, %12 : vector<24x256xi1>, vector<24x256xf32>
    %c0_5 = arith.constant 0 : index
    %c0_6 = arith.constant 0 : index
    %14 = vector.load %arg4[%c0_5, %c0_6] : memref<24x1xi32, #tpu.memory_space<vmem>>, vector<24x1xi32>
    %cst_7 = arith.constant dense<0xFF800000> : vector<24xf32>
    %15 = vector.multi_reduction <maximumf>, %13, %cst_7 [1] : vector<24x256xf32> to vector<24xf32>
    %16 = vector.shape_cast %15 : vector<24xf32> to vector<24x1xf32>
    %c0_8 = arith.constant 0 : index
    %c0_9 = arith.constant 0 : index
    %17 = vector.load %arg6[%c0_8, %c0_9] : memref<24x1xf32, #tpu.memory_space<vmem>>, vector<24x1xf32>
    %18 = arith.maximumf %17, %16 : vector<24x1xf32>
    %c0_10 = arith.constant 0 : index
    %c0_11 = arith.constant 0 : index
    %19 = vector.load %arg6[%c0_10, %c0_11] : memref<24x1xf32, #tpu.memory_space<vmem>>, vector<24x1xf32>
    %20 = arith.subf %19, %18 : vector<24x1xf32>
    %21 = math.exp %20 : vector<24x1xf32>
    %c0_12 = arith.constant 0 : index
    %c0_13 = arith.constant 0 : index
    %22 = vector.load %arg7[%c0_12, %c0_13] : memref<24x1xf32, #tpu.memory_space<vmem>>, vector<24x1xf32>
    %23 = arith.mulf %21, %22 : vector<24x1xf32>
    %24 = vector.broadcast %18 : vector<24x1xf32> to vector<24x256xf32>
    %25 = arith.subf %13, %24 : vector<24x256xf32>
    %26 = math.exp %25 : vector<24x256xf32>
    %cst_14 = arith.constant dense<0.000000e+00> : vector<24xf32>
    %27 = vector.multi_reduction <add>, %26, %cst_14 [1] : vector<24x256xf32> to vector<24xf32>
    %28 = vector.shape_cast %27 : vector<24xf32> to vector<24x1xf32>
    %29 = arith.addf %23, %28 : vector<24x1xf32>
    %c0_15 = arith.constant 0 : index
    %c0_16 = arith.constant 0 : index
    %30 = vector.load %arg7[%c0_15, %c0_16] : memref<24x1xf32, #tpu.memory_space<vmem>>, vector<24x1xf32>
    tpu.vector_store %arg7[%c0_15, %c0_16], %29 {strides = array<i32>} : memref<24x1xf32, #tpu.memory_space<vmem>>, vector<24x1xf32>,
    %c0_17 = arith.constant 0 : index
    %c0_18 = arith.constant 0 : index
    %31 = vector.load %arg6[%c0_17, %c0_18] : memref<24x1xf32, #tpu.memory_space<vmem>>, vector<24x1xf32>
    tpu.vector_store %arg6[%c0_17, %c0_18], %18 {strides = array<i32>} : memref<24x1xf32, #tpu.memory_space<vmem>>, vector<24x1xf32>,
    %c0_19 = arith.constant 0 : index
    %c0_20 = arith.constant 0 : index
    %32 = vector.load %arg8[%c0_19, %c0_20] : memref<24x1xf32, #tpu.memory_space<vmem>>, vector<24x1xf32>
    %33 = vector.broadcast %14 : vector<24x1xi32> to vector<24x256xi32>
    %34 = arith.cmpi eq, %9, %33 : vector<24x256xi32>
    %cst_21 = arith.constant 0.000000e+00 : f32
    %35 = vector.broadcast %cst_21 : f32 to vector<24x256xf32>
    %36 = arith.select %34, %13, %35 : vector<24x256xi1>, vector<24x256xf32>
    %cst_22 = arith.constant dense<0.000000e+00> : vector<24xf32>
    %37 = vector.multi_reduction <add>, %36, %cst_22 [1] : vector<24x256xf32> to vector<24xf32>
    %38 = vector.shape_cast %37 : vector<24xf32> to vector<24x1xf32>
    %39 = arith.addf %32, %38 : vector<24x1xf32>
    %c0_23 = arith.constant 0 : index
    %c0_24 = arith.constant 0 : index
    %40 = vector.load %arg8[%c0_23, %c0_24] : memref<24x1xf32, #tpu.memory_space<vmem>>, vector<24x1xf32>
    tpu.vector_store %arg8[%c0_23, %c0_24], %39 {strides = array<i32>} : memref<24x1xf32, #tpu.memory_space<vmem>>, vector<24x1xf32>,
    %c0_i32_25 = arith.constant 0 : i32
    %41 = arith.cmpi eq, %arg1, %c0_i32_25 : i32
    %42 = arith.extui %41 : i1 to i32
    %c0_i32_26 = arith.constant 0 : i32
    %43 = arith.cmpi ne, %42, %c0_i32_26 : i32
    scf.if %43 {
      %c0_27 = arith.constant 0 : index
      %c0_28 = arith.constant 0 : index
      %44 = vector.load %arg6[%c0_27, %c0_28] : memref<24x1xf32, #tpu.memory_space<vmem>>, vector<24x1xf32>
      %c0_29 = arith.constant 0 : index
      %c0_30 = arith.constant 0 : index
      %45 = vector.load %arg7[%c0_29, %c0_30] : memref<24x1xf32, #tpu.memory_space<vmem>>, vector<24x1xf32>
      %46 = math.log %45 : vector<24x1xf32>
      %47 = arith.addf %44, %46 : vector<24x1xf32>
      %c0_i32_31 = arith.constant 0 : i32
      %48 = vector.broadcast %c0_i32_31 : i32 to vector<24x1xi32>
      %49 = arith.cmpi sge, %14, %48 : vector<24x1xi32>
      %c0_32 = arith.constant 0 : index
      %c0_33 = arith.constant 0 : index
      %50 = vector.load %arg8[%c0_32, %c0_33] : memref<24x1xf32, #tpu.memory_space<vmem>>, vector<24x1xf32>
      %51 = arith.subf %47, %50 : vector<24x1xf32>
      %cst_34 = arith.constant 0.000000e+00 : f32
      %52 = vector.broadcast %cst_34 : f32 to vector<24x1xf32>
      %53 = arith.select %49, %51, %52 : vector<24x1xi1>, vector<24x1xf32>
      %54 = vector.shape_cast %53 : vector<24x1xf32> to vector<1x24x1xf32>
      %cst_35 = arith.constant dense<0.000000e+00> : vector<1xf32>
      %55 = vector.multi_reduction <add>, %54, %cst_35 [1, 2] : vector<1x24x1xf32> to vector<1xf32>
      %56 = vector.shape_cast %55 : vector<1xf32> to vector<1x1x1xf32>
      %57 = vector.extract %56[0, 0, 0] : f32 from vector<1x1x1xf32>
      %58 = tpu.iota {dimensions = array<i32: 2>} : vector<1x1x128xi32>
      %c0_i32_36 = arith.constant 0 : i32
      %59 = vector.broadcast %c0_i32_36 : i32 to vector<1x1x128xi32>
      %60 = arith.cmpi eq, %58, %59 : vector<1x1x128xi32>
      %cst_37 = arith.constant 0.000000e+00 : f32
      %61 = vector.broadcast %57 : f32 to vector<1x1x128xf32>
      %62 = vector.broadcast %cst_37 : f32 to vector<1x1x128xf32>
      %63 = arith.select %60, %61, %62 : vector<1x1x128xi1>, vector<1x1x128xf32>
      %c0_38 = arith.constant 0 : index
      %c0_39 = arith.constant 0 : index
      %c0_40 = arith.constant 0 : index
      %64 = vector.load %arg5[%c0_38, %c0_39, %c0_40] : memref<1x1x128xf32, #tpu.memory_space<vmem>>, vector<1x1x128xf32>
      tpu.vector_store %arg5[%c0_38, %c0_39, %c0_40], %63 {strides = array<i32>} : memref<1x1x128xf32, #tpu.memory_space<vmem>>, vector<1x1x128xf32>,
    } else {
    }
    return
  }
  func.func @transform_0(%arg0: i32, %arg1: i32) -> (i32, i32) {
    %c0_i32 = arith.constant 0 : i32
    %c0_i32_0 = arith.constant 0 : i32
    return %arg0, %c0_i32 : i32, i32
  }
  func.func @transform_1(%arg0: i32, %arg1: i32) -> (i32, i32) {
    %c0_i32 = arith.constant 0 : i32
    %c0_i32_0 = arith.constant 0 : i32
    return %arg1, %c0_i32 : i32, i32
  }
  func.func @transform_2(%arg0: i32, %arg1: i32) -> (i32, i32) {
    %c0_i32 = arith.constant 0 : i32
    %c0_i32_0 = arith.constant 0 : i32
    return %arg0, %c0_i32 : i32, i32
  }
  func.func @transform_3(%arg0: i32, %arg1: i32) -> (i32, i32, i32) {
    %c0_i32 = arith.constant 0 : i32
    %c0_i32_0 = arith.constant 0 : i32
    %c0_i32_1 = arith.constant 0 : i32
    return %arg0, %c0_i32, %c0_i32_0 : i32, i32, i32
  }
}

</mosaic_0001>

<llo_original>
// kernel: tpu_custom_call.1
$region0: #{tpu_custom_call.1}
  #allocation0 [shape = 'u32[]', space=smem, size = 0x4, offset = 0x4, fixed_abs, tag = 'smem constant byte address 0x4 - core index']
  #allocation1 [shape = 'u32[144,128]{1,0:T(1,128)}', space=vmem, size = 0x12000, scoped, tag = 'internal scratch']
  #allocation2 [shape = 'f32[24,1]{1,0:T(8,128)}', space=vmem, size = 0x3000, scoped, tag = 'scratch operand']
  #allocation3 [shape = 'f32[24,1]{1,0:T(8,128)}', space=vmem, size = 0x3000, scoped, tag = 'scratch operand']
  #allocation4 [shape = 'f32[24,1]{1,0:T(8,128)}', space=vmem, size = 0x3000, scoped, tag = 'scratch operand']
  %s0 = inlined_call_operand.vmem [shape: f32[24,32], index: 0, kind: input, shape index: {}]
  %s1 = inlined_call_operand.vmem [shape: f32[256,32], index: 1, kind: input, shape index: {}]
  %s2 = inlined_call_operand.vmem [shape: s32[24,1], index: 2, kind: input, shape index: {}]
  %s3 = inlined_call_operand.hbm [shape: f32[1,1,128], index: 3, kind: output, shape index: {}]
  %s4 = sld [smem:[#allocation0]]
  $region30: #{tpu_custom_call.1} parent=0
    _
  %s6 = ssub.s32 1, %s4
  %s7 = scalar_select 0, %s6, %s4
  $region1: #{tpu_custom_call.1} parent=0
    #allocation5 [shape = 'u8[512]{0}', space=vmem, size = 0x400, scoped, tag = 'output window, operand 0, single buffered']
    #allocation6 [shape = 's32[1]{0}', space=sflag, size = 0x4, scoped, tag = 'scoped memory for tpu_custom_call.1']
    %8 = vsyncpa [#allocation6], 0
    // Predicated region
    $region2: #{tpu_custom_call.1} parent=1 // pred_check
      _
    $region3: #{tpu_custom_call.1} parent=1 // pred_check_branch
      %10 = sbr.rel (0) target = $region5
    $region4: #{tpu_custom_call.1} parent=1 // pred_region
      _
    $region5: #{tpu_custom_call.1} parent=1 // pred_fallthru
      _
    // Predicated region
    $region6: #{tpu_custom_call.1} parent=1 // pred_check
      _
    $region7: #{tpu_custom_call.1} parent=1 // pred_check_branch
      %12 = sbr.rel (0) target = $region9
    $region8: #{tpu_custom_call.1} parent=1 // pred_region
      _
    $region9: #{tpu_custom_call.1} parent=1 // pred_fallthru
      _
    // Predicated region
    $region10: #{tpu_custom_call.1} parent=1 // pred_check
      _
    $region11: #{tpu_custom_call.1} parent=1 // pred_check_branch
      %14 = sbr.rel (0) target = $region13
    $region12: #{tpu_custom_call.1} parent=1 // pred_region
      _
    $region13: #{tpu_custom_call.1} parent=1 // pred_fallthru
      _
    %p15 = scmp.eq.s32.totalorder 0, 0
    // Predicated region
    $region14: #{tpu_custom_call.1} parent=1 // pred_check
      %p16 = pneg %p15
    $region15: #{tpu_custom_call.1} parent=1 // pred_check_branch
      %18 = sbr.rel (%p16) target = $region17
    $region16: #{tpu_custom_call.1} parent=1 // pred_region
      %vm19 = vcmask 7168
      %20 = vst.msk [vmem:[#allocation2] sm:$0xff] %vm19, -inf
      %21 = vst.msk [vmem:[#allocation2 + $0x8] sm:$0xff] %vm19, -inf
      %22 = vst.msk [vmem:[#allocation2 + $0x10] sm:$0xff] %vm19, -inf
      %23 = vst.msk [vmem:[#allocation3] sm:$0xff] %vm19, 0.0
      %24 = vst.msk [vmem:[#allocation3 + $0x8] sm:$0xff] %vm19, 0.0
      %25 = vst.msk [vmem:[#allocation3 + $0x10] sm:$0xff] %vm19, 0.0
      %26 = vst.msk [vmem:[#allocation4] sm:$0xff] %vm19, 0.0
      %27 = vst.msk [vmem:[#allocation4 + $0x8] sm:$0xff] %vm19, 0.0
      %28 = vst.msk [vmem:[#allocation4 + $0x10] sm:$0xff] %vm19, 0.0
    $region17: #{tpu_custom_call.1} parent=1 // pred_fallthru
      _
    %v29 = vld [vmem:[%s0] sm:$0xff]
    %v30 = vld [vmem:[%s0 + $0x8] sm:$0xff]
    %v31 = vld [vmem:[%s0 + $0x10] sm:$0xff]
    %v32 = vld [vmem:[%s1] sm:$0xff]
    %v33 = vld [vmem:[%s1 + $0x8] sm:$0xff]
    %v34 = vld [vmem:[%s1 + $0x10] sm:$0xff]
    %v35 = vld [vmem:[%s1 + $0x18] sm:$0xff]
    %v36 = vld [vmem:[%s1 + $0x20] sm:$0xff]
    %v37 = vld [vmem:[%s1 + $0x28] sm:$0xff]
    %v38 = vld [vmem:[%s1 + $0x30] sm:$0xff]
    %v39 = vld [vmem:[%s1 + $0x38] sm:$0xff]
    %v40 = vld [vmem:[%s1 + $0x40] sm:$0xff]
    %v41 = vld [vmem:[%s1 + $0x48] sm:$0xff]
    %v42 = vld [vmem:[%s1 + $0x50] sm:$0xff]
    %v43 = vld [vmem:[%s1 + $0x58] sm:$0xff]
    %v44 = vld [vmem:[%s1 + $0x60] sm:$0xff]
    %v45 = vld [vmem:[%s1 + $0x68] sm:$0xff]
    %v46 = vld [vmem:[%s1 + $0x70] sm:$0xff]
    %v47 = vld [vmem:[%s1 + $0x78] sm:$0xff]
    %v48 = vld [vmem:[%s1 + $0x80] sm:$0xff]
    %v49 = vld [vmem:[%s1 + $0x88] sm:$0xff]
    %v50 = vld [vmem:[%s1 + $0x90] sm:$0xff]
    %v51 = vld [vmem:[%s1 + $0x98] sm:$0xff]
    %v52 = vld [vmem:[%s1 + $0xa0] sm:$0xff]
    %v53 = vld [vmem:[%s1 + $0xa8] sm:$0xff]
    %v54 = vld [vmem:[%s1 + $0xb0] sm:$0xff]
    %v55 = vld [vmem:[%s1 + $0xb8] sm:$0xff]
    %v56 = vld [vmem:[%s1 + $0xc0] sm:$0xff]
    %v57 = vld [vmem:[%s1 + $0xc8] sm:$0xff]
    %v58 = vld [vmem:[%s1 + $0xd0] sm:$0xff]
    %v59 = vld [vmem:[%s1 + $0xd8] sm:$0xff]
    %v60 = vld [vmem:[%s1 + $0xe0] sm:$0xff]
    %v61 = vld [vmem:[%s1 + $0xe8] sm:$0xff]
    %v62 = vld [vmem:[%s1 + $0xf0] sm:$0xff]
    %v63 = vld [vmem:[%s1 + $0xf8] sm:$0xff]
    %vm64 = vcmask 261120
    %v66 = vsel %vm64, %v29, 0
    %v69 = vsel %vm64, %v30, 0
    %v72 = vsel %vm64, %v31, 0
    %v75 = vsel %vm64, %v32, 0
    %v78 = vsel %vm64, %v33, 0
    %v81 = vsel %vm64, %v34, 0
    %v84 = vsel %vm64, %v35, 0
    %v87 = vsel %vm64, %v36, 0
    %v90 = vsel %vm64, %v37, 0
    %v93 = vsel %vm64, %v38, 0
    %v96 = vsel %vm64, %v39, 0
    %v99 = vsel %vm64, %v40, 0
    %v102 = vsel %vm64, %v41, 0
    %v105 = vsel %vm64, %v42, 0
    %v108 = vsel %vm64, %v43, 0
    %v111 = vsel %vm64, %v44, 0
    %v114 = vsel %vm64, %v45, 0
    %v117 = vsel %vm64, %v46, 0
    %v120 = vsel %vm64, %v47, 0
    %v123 = vsel %vm64, %v48, 0
    %v126 = vsel %vm64, %v49, 0
    %v129 = vsel %vm64, %v50, 0
    %v132 = vsel %vm64, %v51, 0
    %v135 = vsel %vm64, %v52, 0
    %v138 = vsel %vm64, %v53, 0
    %v141 = vsel %vm64, %v54, 0
    %v144 = vsel %vm64, %v55, 0
    %v147 = vsel %vm64, %v56, 0
    %v150 = vsel %vm64, %v57, 0
    %v153 = vsel %vm64, %v58, 0
    %v156 = vsel %vm64, %v59, 0
    %v159 = vsel %vm64, %v60, 0
    %v162 = vsel %vm64, %v61, 0
    %v165 = vsel %vm64, %v62, 0
    %v168 = vsel %vm64, %v63, 0
    %170 = vmatprep.subr.mxu0 0.0
    %171 = vmatpush1.xpose.msra.mxu0 %v120
    %172 = vmatprep.subr.mxu0 0.0
    %173 = vmatpush1.xpose.msra.mxu0 %v117
    %174 = vmatprep.subr.mxu0 0.0
    %175 = vmatpush1.xpose.msra.mxu0 %v114
    %176 = vmatprep.subr.mxu0 0.0
    %177 = vmatpush1.xpose.msra.mxu0 %v111
    %178 = vmatprep.subr.mxu0 0.0
    %179 = vmatpush1.xpose.msra.mxu0 %v108
    %180 = vmatprep.subr.mxu0 0.0
    %181 = vmatpush1.xpose.msra.mxu0 %v105
    %182 = vmatprep.subr.mxu0 0.0
    %183 = vmatpush1.xpose.msra.mxu0 %v102
    %184 = vmatprep.subr.mxu0 0.0
    %185 = vmatpush1.xpose.msra.mxu0 %v99
    %186 = vmatprep.subr.mxu0 0.0
    %187 = vmatpush1.xpose.msra.mxu0 %v96
    %188 = vmatprep.subr.mxu0 0.0
    %189 = vmatpush1.xpose.msra.mxu0 %v93
    %190 = vmatprep.subr.mxu0 0.0
    %191 = vmatpush1.xpose.msra.mxu0 %v90
    %192 = vmatprep.subr.mxu0 0.0
    %193 = vmatpush1.xpose.msra.mxu0 %v87
    %194 = vmatprep.subr.mxu0 0.0
    %195 = vmatpush1.xpose.msra.mxu0 %v84
    %196 = vmatprep.subr.mxu0 0.0
    %197 = vmatpush1.xpose.msra.mxu0 %v81
    %198 = vmatprep.subr.mxu0 0.0
    %199 = vmatpush1.xpose.msra.mxu0 %v78
    %200 = vmatprep.subr.mxu0 0.0
    %201 = vmatpush1.xpose.msra.mxu0 %v75
    %202 = vmatprep.subr.mxu0 0.0
    %203 = vmatpush2.xpose.msra.mxu0 %v168
    %204 = vmatprep.subr.mxu0 0.0
    %205 = vmatpush2.xpose.msra.mxu0 %v165
    %206 = vmatprep.subr.mxu0 0.0
    %207 = vmatpush2.xpose.msra.mxu0 %v162
    %208 = vmatprep.subr.mxu0 0.0
    %209 = vmatpush2.xpose.msra.mxu0 %v159
    %210 = vmatprep.subr.mxu0 0.0
    %211 = vmatpush2.xpose.msra.mxu0 %v156
    %212 = vmatprep.subr.mxu0 0.0
    %213 = vmatpush2.xpose.msra.mxu0 %v153
    %214 = vmatprep.subr.mxu0 0.0
    %215 = vmatpush2.xpose.msra.mxu0 %v150
    %216 = vmatprep.subr.mxu0 0.0
    %217 = vmatpush2.xpose.msra.mxu0 %v147
    %218 = vmatprep.subr.mxu0 0.0
    %219 = vmatpush2.xpose.msra.mxu0 %v144
    %220 = vmatprep.subr.mxu0 0.0
    %221 = vmatpush2.xpose.msra.mxu0 %v141
    %222 = vmatprep.subr.mxu0 0.0
    %223 = vmatpush2.xpose.msra.mxu0 %v138
    %224 = vmatprep.subr.mxu0 0.0
    %225 = vmatpush2.xpose.msra.mxu0 %v135
    %226 = vmatprep.subr.mxu0 0.0
    %227 = vmatpush2.xpose.msra.mxu0 %v132
    %228 = vmatprep.subr.mxu0 0.0
    %229 = vmatpush2.xpose.msra.mxu0 %v129
    %230 = vmatprep.subr.mxu0 0.0
    %231 = vmatpush2.xpose.msra.mxu0 %v126
    %232 = vmatprep.subr.mxu0 0.0
    %233 = vmatpush2.xpose.msra.mxu0 %v123
    %234 = vmatprep.mubr.f32.mxu0 0.0
    %235 = vmatmul.mubr.f32.gmra.mxu0 %v66
    %v236 = vpop.f32.mrf.mxu0
    %v237 = vadd.f32 0.0, %v236
    %v238 = vpop.f32.mrf.mxu0
    %v239 = vadd.f32 0.0, %v238
    %240 = vmatprep.mubr.f32.mxu0 0.0
    %241 = vmatmul.mubr.f32.gmra.mxu0 %v69
    %v242 = vpop.f32.mrf.mxu0
    %v243 = vadd.f32 0.0, %v242
    %v244 = vpop.f32.mrf.mxu0
    %v245 = vadd.f32 0.0, %v244
    %246 = vmatprep.mubr.f32.mxu0 0.0
    %247 = vmatmul.mubr.f32.gmra.mxu0 %v72
    %v248 = vpop.f32.mrf.mxu0
    %v249 = vadd.f32 0.0, %v248
    %v250 = vpop.f32.mrf.mxu0
    %v251 = vadd.f32 0.0, %v250
    %252 = vdwg.mxu0
    %v253 = vlaneseq
    %v254 = vand.u32 %v253, 127
    %v255 = vadd.s32 %v254, 128
    %s256 = smul.u32 0, 256
    %v257 = vstv %s256
    %v258 = vadd.s32 %v254, %v257
    %v259 = vadd.s32 %v255, %v257
    %vm260 = vcmp.lt.s32.totalorder %v258, 160
    %vm261 = vcmp.lt.s32.totalorder %v259, 160
    %v262 = vsel %vm260, %v237, -inf
    %v263 = vsel %vm261, %v239, -inf
    %v264 = vsel %vm260, %v243, -inf
    %v265 = vsel %vm261, %v245, -inf
    %v266 = vsel %vm260, %v249, -inf
    %v267 = vsel %vm261, %v251, -inf
    %v268 = vld [vmem:[%s2] sm:$0xff]
    %v269 = vld [vmem:[%s2 + $0x8] sm:$0xff]
    %v270 = vld [vmem:[%s2 + $0x10] sm:$0xff]
    %v271 = vmax.f32 %v262, %v263
    %272 = vmax.xlane.f32.xlu0 %v271
    %v273 = vpop.xlane.xlu0 %272
    %v274 = vmax.f32 %v264, %v265
    %275 = vmax.xlane.f32.xlu0 %v274
    %v276 = vpop.xlane.xlu0 %275
    %v277 = vmax.f32 %v266, %v267
    %278 = vmax.xlane.f32.xlu0 %v277
    %v279 = vpop.xlane.xlu0 %278
    %v280 = vld [vmem:[#allocation2] sm:$0xff]
    %v281 = vld [vmem:[#allocation2 + $0x8] sm:$0xff]
    %v282 = vld [vmem:[#allocation2 + $0x10] sm:$0xff]
    %v283 = vmax.f32 %v280, %v273
    %v284 = vmax.f32 %v281, %v276
    %v285 = vmax.f32 %v282, %v279
    %v286 = vsub.f32 %v280, %v283
    %v287 = vsub.f32 %v281, %v284
    %v288 = vsub.f32 %v282, %v285
    %v289 = vmul.f32 %v286, 1.442695
    %v290 = vpow.pop %v289
    %v291 = vmul.f32 %v287, 1.442695
    %v292 = vpow.pop %v291
    %v293 = vmul.f32 %v288, 1.442695
    %v294 = vpow.pop %v293
    %v295 = vld [vmem:[#allocation3] sm:$0xff]
    %v296 = vld [vmem:[#allocation3 + $0x8] sm:$0xff]
    %v297 = vld [vmem:[#allocation3 + $0x10] sm:$0xff]
    %v298 = vmul.f32 %v290, %v295
    %v299 = vmul.f32 %v292, %v296
    %v300 = vmul.f32 %v294, %v297
    %302 = vset.pattern.permute.xlu0 0
    %303 = vperm.xlu0 %302, %v283
    %v304 = vpop.permute.xlu0 %303
    %307 = vset.pattern.permute.xlu0 0
    %308 = vperm.xlu0 %307, %v284
    %v309 = vpop.permute.xlu0 %308
    %312 = vset.pattern.permute.xlu0 0
    %313 = vperm.xlu0 %312, %v285
    %v314 = vpop.permute.xlu0 %313
    %v316 = vsub.f32 %v262, %v304
    %v317 = vsub.f32 %v263, %v304
    %v318 = vsub.f32 %v264, %v309
    %v319 = vsub.f32 %v265, %v309
    %v320 = vsub.f32 %v266, %v314
    %v321 = vsub.f32 %v267, %v314
    %v322 = vmul.f32 %v316, 1.442695
    %v323 = vpow.pop %v322
    %v324 = vmul.f32 %v317, 1.442695
    %v325 = vpow.pop %v324
    %v326 = vmul.f32 %v318, 1.442695
    %v327 = vpow.pop %v326
    %v328 = vmul.f32 %v319, 1.442695
    %v329 = vpow.pop %v328
    %v330 = vmul.f32 %v320, 1.442695
    %v331 = vpow.pop %v330
    %v332 = vmul.f32 %v321, 1.442695
    %v333 = vpow.pop %v332
    %v334 = vadd.f32 %v323, %v325
    %335 = vadd.xlane.f32.xlu0 %v334
    %v336 = vpop.xlane.xlu0 %335
    %v337 = vadd.f32 %v327, %v329
    %338 = vadd.xlane.f32.xlu0 %v337
    %v339 = vpop.xlane.xlu0 %338
    %v340 = vadd.f32 %v331, %v333
    %341 = vadd.xlane.f32.xlu0 %v340
    %v342 = vpop.xlane.xlu0 %341
    %v343 = vadd.f32 %v298, %v336
    %v344 = vadd.f32 %v299, %v339
    %v345 = vadd.f32 %v300, %v342
    %vm346 = vcmask 7168
    %347 = vst.msk [vmem:[#allocation3] sm:$0xff] %vm346, %v343
    %348 = vst.msk [vmem:[#allocation3 + $0x8] sm:$0xff] %vm346, %v344
    %349 = vst.msk [vmem:[#allocation3 + $0x10] sm:$0xff] %vm346, %v345
    %350 = vst.msk [vmem:[#allocation2] sm:$0xff] %vm346, %v283
    %351 = vst.msk [vmem:[#allocation2 + $0x8] sm:$0xff] %vm346, %v284
    %352 = vst.msk [vmem:[#allocation2 + $0x10] sm:$0xff] %vm346, %v285
    %v353 = vld [vmem:[#allocation4] sm:$0xff]
    %v354 = vld [vmem:[#allocation4 + $0x8] sm:$0xff]
    %v355 = vld [vmem:[#allocation4 + $0x10] sm:$0xff]
    %356 = vset.pattern.permute.xlu0 0
    %357 = vperm.xlu0 %356, %v268
    %v358 = vpop.permute.xlu0 %357
    %359 = vset.pattern.permute.xlu0 0
    %360 = vperm.xlu0 %359, %v269
    %v361 = vpop.permute.xlu0 %360
    %362 = vset.pattern.permute.xlu0 0
    %363 = vperm.xlu0 %362, %v270
    %v364 = vpop.permute.xlu0 %363
    %vm365 = vcmp.eq.s32.totalorder %v258, %v358
    %vm366 = vcmp.eq.s32.totalorder %v259, %v358
    %vm367 = vcmp.eq.s32.totalorder %v258, %v361
    %vm368 = vcmp.eq.s32.totalorder %v259, %v361
    %vm369 = vcmp.eq.s32.totalorder %v258, %v364
    %vm370 = vcmp.eq.s32.totalorder %v259, %v364
    %v371 = vsel %vm365, %v262, 0.0
    %v372 = vsel %vm366, %v263, 0.0
    %v373 = vsel %vm367, %v264, 0.0
    %v374 = vsel %vm368, %v265, 0.0
    %v375 = vsel %vm369, %v266, 0.0
    %v376 = vsel %vm370, %v267, 0.0
    %v377 = vadd.f32 %v371, %v372
    %378 = vadd.xlane.f32.xlu0 %v377
    %v379 = vpop.xlane.xlu0 %378
    %v380 = vadd.f32 %v373, %v374
    %381 = vadd.xlane.f32.xlu0 %v380
    %v382 = vpop.xlane.xlu0 %381
    %v383 = vadd.f32 %v375, %v376
    %384 = vadd.xlane.f32.xlu0 %v383
    %v385 = vpop.xlane.xlu0 %384
    %v386 = vadd.f32 %v353, %v379
    %v387 = vadd.f32 %v354, %v382
    %v388 = vadd.f32 %v355, %v385
    %389 = vst.msk [vmem:[#allocation4] sm:$0xff] %vm346, %v386
    %390 = vst.msk [vmem:[#allocation4 + $0x8] sm:$0xff] %vm346, %v387
    %391 = vst.msk [vmem:[#allocation4 + $0x10] sm:$0xff] %vm346, %v388
    // Predicated region
    $region18: #{tpu_custom_call.1} parent=1 // pred_check
      %p392 = pneg %p15
    $region19: #{tpu_custom_call.1} parent=1 // pred_check_branch
      %394 = sbr.rel (%p392) target = $region21
    $region20: #{tpu_custom_call.1} parent=1 // pred_region
      %v395 = vld [vmem:[#allocation2] sm:$0xff]
      %v396 = vld [vmem:[#allocation2 + $0x8] sm:$0xff]
      %v397 = vld [vmem:[#allocation2 + $0x10] sm:$0xff]
      %v398 = vld [vmem:[#allocation3] sm:$0xff]
      %v399 = vld [vmem:[#allocation3 + $0x8] sm:$0xff]
      %v400 = vld [vmem:[#allocation3 + $0x10] sm:$0xff]
      %v401 = vlog2.pop %v398
      %v402 = vmul.f32 %v401, 0.6931472
      %v403 = vlog2.pop %v399
      %v404 = vmul.f32 %v403, 0.6931472
      %v405 = vlog2.pop %v400
      %v406 = vmul.f32 %v405, 0.6931472
      %v407 = vadd.f32 %v395, %v402
      %v408 = vadd.f32 %v396, %v404
      %v409 = vadd.f32 %v397, %v406
      %vm410 = vcmp.ge.s32.totalorder %v268, 0
      %vm411 = vcmp.ge.s32.totalorder %v269, 0
      %vm412 = vcmp.ge.s32.totalorder %v270, 0
      %v413 = vld [vmem:[#allocation4] sm:$0xff]
      %v414 = vld [vmem:[#allocation4 + $0x8] sm:$0xff]
      %v415 = vld [vmem:[#allocation4 + $0x10] sm:$0xff]
      %v416 = vsub.f32 %v407, %v413
      %v417 = vsub.f32 %v408, %v414
      %v418 = vsub.f32 %v409, %v415
      %v419 = vsel %vm410, %v416, 0.0
      %v420 = vsel %vm411, %v417, 0.0
      %v421 = vsel %vm412, %v418, 0.0
      %v422 = vsel %vm346, %v419, 0.0
      %v423 = vsel %vm346, %v420, 0.0
      %v424 = vadd.f32 %v422, %v423
      %v425 = vsel %vm346, %v421, 0.0
      %v426 = vadd.f32 %v424, %v425
      %427 = vadd.xlane.f32.xlu0 %v426
      %v428 = vpop.xlane.xlu0 %427
      %v429 = vrot.slane %v428, 4
      %v430 = vadd.f32 %v428, %v429
      %v431 = vrot.slane %v430, 2
      %v432 = vadd.f32 %v430, %v431
      %v433 = vrot.slane %v432, 1
      %v434 = vadd.f32 %v432, %v433
      %s435 = vtos %v434
      %vm436 = vcmp.eq.s32.totalorder %v254, 0
      %v437 = vstv %s435
      %v438 = vsel %vm436, %v437, 0.0
      %439 = vst [vmem:[#allocation5] sm:$0x1] %v438
    $region21: #{tpu_custom_call.1} parent=1 // pred_fallthru
      _
    // Predicated region
    $region22: #{tpu_custom_call.1} parent=1 // pred_check
      _
    $region23: #{tpu_custom_call.1} parent=1 // pred_check_branch
      %441 = sbr.rel (0) target = $region25
    $region24: #{tpu_custom_call.1} parent=1 // pred_region
      %s443 = ssub.s32 16, 16
      %444 = vsyncadd [#allocation6], %s443
      %s446 = sshll.u32 [#allocation5], 4
      %s447 = int_to_ptr.vmem [resolvable:$true] %s446
      %449 = dma.vmem_to_hbm [thread:$0]  %s447, 16, %s3, [#allocation6]
    $region25: #{tpu_custom_call.1} parent=1 // pred_fallthru
      _
    // Predicated region
    $region26: #{tpu_custom_call.1} parent=1 // pred_check
      _
    $region27: #{tpu_custom_call.1} parent=1 // pred_check_branch
      %451 = sbr.rel (0) target = $region29
    $region28: #{tpu_custom_call.1} parent=1 // pred_region
      %452 = dma.done [#allocation6], 16
    $region29: #{tpu_custom_call.1} parent=1 // pred_fallthru
      _
    %453 = vsyncpa [#allocation6], 1

</llo_original>
